<compile_context>
chip_gen: v7x
topology: tpu7x:2x2x1
jax: 0.10.0
libtpu: 0.0.40
codegen_flags: <defaults>
</compile_context>

<pallas_src>
import jax
import jax.numpy as jnp
from jax.experimental import pallas as pl
from jax.experimental.pallas import tpu as pltpu


def _classifier_head_kernel(x_ref, wstem_ref, bstem_ref, wfc_ref, bfc_ref, out_ref):
    """One grid step == one batch tile, computed with plain 2-D MXU matmuls.

    x_ref:     (Bt*Cin, HW)     f32   free reshape of NCHW; bf16 cast happens here
    wstem_ref: (Bt*Cf, Bt*Cin)  bf16  block-diagonal stem weight (one block per sample)
    bstem_ref: (Bt*Cf, 1)       f32
    wfc_ref:   (Bt*T, Bt*Cf)    f32   block-diagonal fc weight^T, pre-scaled by 1/HW
    bfc_ref:   (Bt*T, 1)        f32
    out_ref:   (Bt*T, 1)        f32   wrapper free-reshapes (B*T, 1) -> (B, T)
    """
    # In-kernel bf16 downcast: x stays f32 in HBM (no extra HBM round trip).
    x = x_ref[...].astype(jnp.bfloat16)                                      # (Bt*Cin, HW)

    # TODO(synk): timm backbone.forward_features cannot be reproduced without
    # the full architecture; a synthetic 1x1-conv + ReLU stem stands in.
    # The whole batch tile is one MXU contraction (HW on the lane axis).
    feat = jnp.dot(wstem_ref[...], x, preferred_element_type=jnp.float32)    # (Bt*Cf, HW)
    feat = jnp.maximum(feat + bstem_ref[...], 0.0)                           # lane-dense VPU

    # AdaptiveAvgPool2d(1) + Flatten == mean over HW: a single lane-axis
    # reduce; the 1/HW factor is folded into wfc_ref by the wrapper.
    pooled = jnp.sum(feat, axis=-1, keepdims=True)                           # (Bt*Cf, 1)

    # Dropout(p=0.25): identity at inference (eval mode).
    # fc for all batch slots at once: one small f32 matmul + bias.
    out = jnp.dot(wfc_ref[...], pooled,
                  preferred_element_type=jnp.float32,
                  precision=jax.lax.Precision.HIGHEST)                       # (Bt*T, 1)
    out_ref[...] = (out + bfc_ref[...]).astype(out_ref.dtype)


def _pick_batch_tile(B, Cin, T, HW):
    """Heuristic batch tile.

    The grid is a serial loop on one TensorCore, so extra steps only pay off
    when (a) they let a large x block double-buffer HBM->VMEM (v5e/v6e
    roofline) or (b) the chip has 2 TensorCores (v7x) and each half-batch tile
    still amortizes the ~0.35us/step grid overhead.  Any tile < B must keep
    blocks (8,128)-legal: (tile*Cin) % 8 == 0 and (tile*T) % 8 == 0.
    """
    try:
        kind = jax.devices()[0].device_kind.lower().replace(" ", "")
    except Exception:
        kind = ""
    is_v7x = ("v7" in kind) or ("tpu7" in kind)

    total_x_bytes = B * Cin * HW * 4  # f32 in HBM
    if total_x_bytes >= (32 << 20):
        want_steps = 8
    elif total_x_bytes >= (8 << 20):
        want_steps = 4
    elif is_v7x and total_x_bytes >= (2 << 20):
        want_steps = 2
    else:
        want_steps = 1

    steps = want_steps
    while steps > 1:
        if B % steps == 0:
            tile = B // steps
            if (tile * Cin) % 8 == 0 and (tile * T) % 8 == 0:
                return tile
        steps -= 1
    return B


def classifier_road_field_forward(x_nchw, wconv, bconv, wfc, bfc, *, batch_tile=None):
    """Stem(stand-in) -> ReLU -> global avg pool -> dropout(identity) -> Linear.

    x_nchw: (B, Cin, H, W) f32.  wconv: (Cin, Cf).  bconv: (1, Cf) or (Cf,).
    wfc: (Cf, T).  bfc: (1, T) or (T,).  Returns (B, T) f32.
    """
    B, Cin, H, W = x_nchw.shape
    HW = H * W
    Cf = wconv.shape[1]
    T = wfc.shape[1]

    if batch_tile is None:
        batch_tile = _pick_batch_tile(B, Cin, T, HW)
    assert B % batch_tile == 0, "batch_tile must divide B"
    num_tiles = B // batch_tile
    if num_tiles > 1:
        # (8,128) rule: a block that is not the full array must have its
        # second-minor dim divisible by 8 (last dims here are full: HW / 1).
        assert (batch_tile * Cin) % 8 == 0 and (batch_tile * T) % 8 == 0, (
            "with batch_tile < B, batch_tile*Cin and batch_tile*T must be "
            "multiples of 8 (pad the batch or use batch_tile == B)")

    # (B, Cin, H, W) -> (B*Cin, HW): free reshape, x kept f32 in HBM (the bf16
    # downcast happens inside the kernel).
    x2d = x_nchw.reshape(B * Cin, HW)

    # Trace-time parameter prep (tiny, one-off).  Block-diagonal replication
    # over the batch tile turns the per-sample stem / fc into ONE plain 2-D
    # matmul each per grid step with zero in-kernel transposes or relayouts of
    # the NCHW-derived (Bt*Cin, HW) block.  The extra (all-zero) stem MACs are
    # negligible next to the MXU slack of this memory-bound head and the tiles
    # stay small; a real backbone would not need this trick.
    eye_bt = jnp.eye(batch_tile, dtype=jnp.float32)
    wstem = jnp.kron(eye_bt, jnp.transpose(wconv)).astype(jnp.bfloat16)      # (Bt*Cf, Bt*Cin)
    bstem = jnp.tile(bconv.reshape(Cf, 1).astype(jnp.float32), (batch_tile, 1))
    wfc_t = (jnp.transpose(wfc) * (1.0 / HW)).astype(jnp.float32)            # fold mean's 1/HW
    wfc_blk = jnp.kron(eye_bt, wfc_t)                                        # (Bt*T, Bt*Cf)
    bfc_col = jnp.tile(bfc.reshape(T, 1).astype(jnp.float32), (batch_tile, 1))

    # Explicit VMEM budget (sized against v7x's smaller VMEM as the tight
    # case): double-buffered x/out tiles + resident padded weights.
    def _rup(v, m):
        return (v + m - 1) // m * m

    x_tile_bytes = _rup(batch_tile * Cin, 8) * _rup(HW, 128) * 4             # f32 tile
    out_tile_bytes = _rup(batch_tile * T, 8) * 128 * 4
    w_bytes = (_rup(batch_tile * Cf, 16) * _rup(batch_tile * Cin, 128) * 2   # bf16 stem W
               + _rup(batch_tile * Cf, 8) * 128 * 4                          # stem bias
               + _rup(batch_tile * T, 8) * _rup(batch_tile * Cf, 128) * 4    # fc W
               + _rup(batch_tile * T, 8) * 128 * 4)                          # fc bias
    vmem_needed = 2 * (x_tile_bytes + out_tile_bytes) + 2 * w_bytes
    vmem_limit = int(min(48 << 20, max(16 << 20, 2 * vmem_needed)))

    out_col = pl.pallas_call(
        _classifier_head_kernel,
        out_shape=jax.ShapeDtypeStruct((B * T, 1), jnp.float32),
        grid_spec=pl.GridSpec(
            grid=(num_tiles,),
            in_specs=[
                pl.BlockSpec((batch_tile * Cin, HW), lambda i: (i, 0)),
                pl.BlockSpec((batch_tile * Cf, batch_tile * Cin), lambda i: (0, 0)),
                pl.BlockSpec((batch_tile * Cf, 1), lambda i: (0, 0)),
                pl.BlockSpec((batch_tile * T, batch_tile * Cf), lambda i: (0, 0)),
                pl.BlockSpec((batch_tile * T, 1), lambda i: (0, 0)),
            ],
            out_specs=pl.BlockSpec((batch_tile * T, 1), lambda i: (i, 0)),
        ),
        compiler_params=pltpu.CompilerParams(
            # Only meaningful when num_tiles > 1 (v7x two-TensorCore split or
            # pipelined large batches); a documented no-op for grid=(1,).
            dimension_semantics=("parallel",),
            vmem_limit_bytes=vmem_limit,
        ),
    )(x2d, wstem, bstem, wfc_blk, bfc_col)

    return out_col.reshape(B, T)  # free reshape of the columnar output


if __name__ == "__main__":
    # Small shapes consistent with the module's forward.
    B, Cin, H, W = 2, 4, 16, 16       # input image (NCHW)
    Cf = 32                           # backbone feature channels (in_features)
    T = 2                             # target_size

    key = jax.random.PRNGKey(0)
    k_x, k_wc, k_bc, k_wf, k_bf = jax.random.split(key, 5)

    x = jax.random.normal(k_x, (B, Cin, H, W), dtype=jnp.float32)

    # Deterministic synthetic parameters.
    wconv = 0.1 * jax.random.normal(k_wc, (Cin, Cf), dtype=jnp.float32)
    bconv = 0.1 * jax.random.normal(k_bc, (1, Cf), dtype=jnp.float32)
    wfc = 0.1 * jax.random.normal(k_wf, (Cf, T), dtype=jnp.float32)
    bfc = 0.1 * jax.random.normal(k_bf, (1, T), dtype=jnp.float32)

    pred = classifier_road_field_forward(x, wconv, bconv, wfc, bfc)
    jax.block_until_ready(pred)
    assert pred.shape == (B, T)

    # Pure-JAX reference (same bf16 rounding of the MXU stem operands, f32 math).
    x_bf = x.reshape(B, Cin, H * W).astype(jnp.bfloat16).astype(jnp.float32)
    wc_bf = wconv.astype(jnp.bfloat16).astype(jnp.float32)
    feat = jnp.maximum(
        jnp.einsum("bcs,cf->bsf", x_bf, wc_bf,
                   precision=jax.lax.Precision.HIGHEST) + bconv[None],
        0.0)
    pooled = jnp.mean(feat, axis=1)                              # (B, Cf)
    ref = jnp.dot(pooled, wfc, precision=jax.lax.Precision.HIGHEST) + bfc
    assert jnp.allclose(pred, ref, atol=1e-3, rtol=1e-3), "mismatch vs reference"

    print("KERNEL_OK")
</pallas_src>

<mosaic_0001>
module attributes {stable_mosaic.version = 11 : i64} {
  func.func @_classifier_head_kernel(%arg0: i32, %arg1: memref<8x256xf32, #tpu.memory_space<vmem>>, %arg2: memref<64x8xbf16, #tpu.memory_space<vmem>>, %arg3: memref<64x1xf32, #tpu.memory_space<vmem>>, %arg4: memref<4x64xf32, #tpu.memory_space<vmem>>, %arg5: memref<4x1xf32, #tpu.memory_space<vmem>>, %arg6: memref<4x1xf32, #tpu.memory_space<vmem>>) attributes {dimension_semantics = [#tpu.dimension_semantics<parallel>], iteration_bounds = array<i64: 1>, scalar_prefetch = 0 : i64, scratch_operands = 0 : i64, tpu.core_type = #tpu.core_type<tc>, window_params = [{transform_indices = @transform_0, window_bounds = array<i64: 8, 256>}, {pipeline_mode = #tpu.pipeline_mode<synchronous>, transform_indices = @transform_1, window_bounds = array<i64: 64, 8>}, {pipeline_mode = #tpu.pipeline_mode<synchronous>, transform_indices = @transform_2, window_bounds = array<i64: 64, 1>}, {pipeline_mode = #tpu.pipeline_mode<synchronous>, transform_indices = @transform_3, window_bounds = array<i64: 4, 64>}, {pipeline_mode = #tpu.pipeline_mode<synchronous>, transform_indices = @transform_4, window_bounds = array<i64: 4, 1>}, {transform_indices = @transform_5, window_bounds = array<i64: 4, 1>}]} {
    %c0 = arith.constant 0 : index
    %c0_0 = arith.constant 0 : index
    %0 = vector.load %arg1[%c0, %c0_0] : memref<8x256xf32, #tpu.memory_space<vmem>>, vector<8x256xf32>
    %1 = arith.truncf %0 : vector<8x256xf32> to vector<8x256xbf16>
    %c0_1 = arith.constant 0 : index
    %c0_2 = arith.constant 0 : index
    %2 = vector.load %arg2[%c0_1, %c0_2] : memref<64x8xbf16, #tpu.memory_space<vmem>>, vector<64x8xbf16>
    %cst = arith.constant dense<0.000000e+00> : vector<64x256xf32>
    %3 = tpu.matmul %2, %1, %cst {dimension_numbers = #tpu.dot_dimension_numbers<[1], [0], [0], [1], [0, 0, 1, 1], [], []>} : vector<64x8xbf16>, vector<8x256xbf16>, vector<64x256xf32> -> vector<64x256xf32>
    %c0_3 = arith.constant 0 : index
    %c0_4 = arith.constant 0 : index
    %4 = vector.load %arg3[%c0_3, %c0_4] : memref<64x1xf32, #tpu.memory_space<vmem>>, vector<64x1xf32>
    %5 = vector.broadcast %4 : vector<64x1xf32> to vector<64x256xf32>
    %6 = arith.addf %3, %5 : vector<64x256xf32>
    %cst_5 = arith.constant 0.000000e+00 : f32
    %7 = vector.broadcast %cst_5 : f32 to vector<64x256xf32>
    %8 = arith.maximumf %6, %7 : vector<64x256xf32>
    %cst_6 = arith.constant dense<0.000000e+00> : vector<64xf32>
    %9 = vector.multi_reduction <add>, %8, %cst_6 [1] : vector<64x256xf32> to vector<64xf32>
    %10 = vector.shape_cast %9 : vector<64xf32> to vector<64x1xf32>
    %c0_7 = arith.constant 0 : index
    %c0_8 = arith.constant 0 : index
    %11 = vector.load %arg4[%c0_7, %c0_8] : memref<4x64xf32, #tpu.memory_space<vmem>>, vector<4x64xf32>
    %cst_9 = arith.constant dense<0.000000e+00> : vector<4x1xf32>
    %12 = tpu.matmul %11, %10, %cst_9 {dimension_numbers = #tpu.dot_dimension_numbers<[1], [0], [0], [1], [0, 0, 1, 1], [], []>, precision = #tpu.contract_precision<fp32>} : vector<4x64xf32>, vector<64x1xf32>, vector<4x1xf32> -> vector<4x1xf32>
    %c0_10 = arith.constant 0 : index
    %c0_11 = arith.constant 0 : index
    %13 = vector.load %arg5[%c0_10, %c0_11] : memref<4x1xf32, #tpu.memory_space<vmem>>, vector<4x1xf32>
    %14 = arith.addf %12, %13 : vector<4x1xf32>
    %c0_12 = arith.constant 0 : index
    %c0_13 = arith.constant 0 : index
    %15 = vector.load %arg6[%c0_12, %c0_13] : memref<4x1xf32, #tpu.memory_space<vmem>>, vector<4x1xf32>
    tpu.vector_store %arg6[%c0_12, %c0_13], %14 {strides = array<i32>} : memref<4x1xf32, #tpu.memory_space<vmem>>, vector<4x1xf32>,
    return
  }
  func.func @transform_0(%arg0: i32) -> (i32, i32) {
    %c0_i32 = arith.constant 0 : i32
    %c0_i32_0 = arith.constant 0 : i32
    return %arg0, %c0_i32 : i32, i32
  }
  func.func @transform_1(%arg0: i32) -> (i32, i32) {
    %c0_i32 = arith.constant 0 : i32
    %c0_i32_0 = arith.constant 0 : i32
    %c0_i32_1 = arith.constant 0 : i32
    return %c0_i32, %c0_i32_0 : i32, i32
  }
  func.func @transform_2(%arg0: i32) -> (i32, i32) {
    %c0_i32 = arith.constant 0 : i32
    %c0_i32_0 = arith.constant 0 : i32
    %c0_i32_1 = arith.constant 0 : i32
    return %c0_i32, %c0_i32_0 : i32, i32
  }
  func.func @transform_3(%arg0: i32) -> (i32, i32) {
    %c0_i32 = arith.constant 0 : i32
    %c0_i32_0 = arith.constant 0 : i32
    %c0_i32_1 = arith.constant 0 : i32
    return %c0_i32, %c0_i32_0 : i32, i32
  }
  func.func @transform_4(%arg0: i32) -> (i32, i32) {
    %c0_i32 = arith.constant 0 : i32
    %c0_i32_0 = arith.constant 0 : i32
    %c0_i32_1 = arith.constant 0 : i32
    return %c0_i32, %c0_i32_0 : i32, i32
  }
  func.func @transform_5(%arg0: i32) -> (i32, i32) {
    %c0_i32 = arith.constant 0 : i32
    %c0_i32_0 = arith.constant 0 : i32
    return %arg0, %c0_i32 : i32, i32
  }
}

</mosaic_0001>

<llo_original>
// kernel: tpu_custom_call.1
$region0: #{tpu_custom_call.1}
  #allocation0 [shape = 'u32[]', space=smem, size = 0x4, offset = 0x4, fixed_abs, tag = 'smem constant byte address 0x4 - core index']
  #allocation1 [shape = 'u32[144,128]{1,0:T(1,128)}', space=vmem, size = 0x12000, scoped, tag = 'internal scratch']
  %s0 = inlined_call_operand.vmem [shape: f32[8,256], index: 0, kind: input, shape index: {}]
  %s1 = inlined_call_operand.vmem [shape: bf16[64,8], index: 1, kind: input, shape index: {}]
  %s2 = inlined_call_operand.vmem [shape: f32[64,1], index: 2, kind: input, shape index: {}]
  %s3 = inlined_call_operand.vmem [shape: f32[4,64], index: 3, kind: input, shape index: {}]
  %s4 = inlined_call_operand.vmem [shape: f32[4,1], index: 4, kind: input, shape index: {}]
  %s5 = inlined_call_operand.vmem [shape: f32[4,1], index: 5, kind: output, shape index: {}]
  %s6 = sld [smem:[#allocation0]]
  $region30: #{tpu_custom_call.1} parent=0
    _
  %s8 = ssub.s32 1, %s6
  %s9 = scalar_select 0, %s8, %s6
  // Predicated region
  $region2: #{tpu_custom_call.1} parent=0 // pred_check
    _
  $region3: #{tpu_custom_call.1} parent=0 // pred_check_branch
    %11 = sbr.rel (0) target = $region5
  $region4: #{tpu_custom_call.1} parent=0 // pred_region
    _
  $region5: #{tpu_custom_call.1} parent=0 // pred_fallthru
    _
  // Predicated region
  $region6: #{tpu_custom_call.1} parent=0 // pred_check
    _
  $region7: #{tpu_custom_call.1} parent=0 // pred_check_branch
    %13 = sbr.rel (0) target = $region9
  $region8: #{tpu_custom_call.1} parent=0 // pred_region
    _
  $region9: #{tpu_custom_call.1} parent=0 // pred_fallthru
    _
  // Predicated region
  $region10: #{tpu_custom_call.1} parent=0 // pred_check
    _
  $region11: #{tpu_custom_call.1} parent=0 // pred_check_branch
    %15 = sbr.rel (0) target = $region13
  $region12: #{tpu_custom_call.1} parent=0 // pred_region
    _
  $region13: #{tpu_custom_call.1} parent=0 // pred_fallthru
    _
  // Predicated region
  $region14: #{tpu_custom_call.1} parent=0 // pred_check
    _
  $region15: #{tpu_custom_call.1} parent=0 // pred_check_branch
    %17 = sbr.rel (0) target = $region17
  $region16: #{tpu_custom_call.1} parent=0 // pred_region
    _
  $region17: #{tpu_custom_call.1} parent=0 // pred_fallthru
    _
  // Predicated region
  $region18: #{tpu_custom_call.1} parent=0 // pred_check
    _
  $region19: #{tpu_custom_call.1} parent=0 // pred_check_branch
    %19 = sbr.rel (0) target = $region21
  $region20: #{tpu_custom_call.1} parent=0 // pred_region
    _
  $region21: #{tpu_custom_call.1} parent=0 // pred_fallthru
    _
  %v21 = vld [vmem:[%s0] sm:$0xff]
  %v22 = vld [vmem:[%s0 + $0x8] sm:$0xff]
  %v23 = vpack.c.bf16 %v21, %v21
  %v24 = vpack.c.bf16 %v22, %v22
  %v25 = vld [vmem:[%s1] sm:$0xf]
  %v26 = vld [vmem:[%s1 + $0x4] sm:$0xf]
  %v27 = vld [vmem:[%s1 + $0x8] sm:$0xf]
  %v28 = vld [vmem:[%s1 + $0xc] sm:$0xf]
  %v29 = vld [vmem:[%s1 + $0x10] sm:$0xf]
  %v30 = vld [vmem:[%s1 + $0x14] sm:$0xf]
  %v31 = vld [vmem:[%s1 + $0x18] sm:$0xf]
  %v32 = vld [vmem:[%s1 + $0x1c] sm:$0xf]
  %v33 = vld [vmem:[%s2] sm:$0xff]
  %v34 = vld [vmem:[%s2 + $0x8] sm:$0xff]
  %v35 = vld [vmem:[%s2 + $0x10] sm:$0xff]
  %v36 = vld [vmem:[%s2 + $0x18] sm:$0xff]
  %v37 = vld [vmem:[%s2 + $0x20] sm:$0xff]
  %v38 = vld [vmem:[%s2 + $0x28] sm:$0xff]
  %v39 = vld [vmem:[%s2 + $0x30] sm:$0xff]
  %v40 = vld [vmem:[%s2 + $0x38] sm:$0xff]
  %42 = vset.pattern.permute.xlu0 0
  %43 = vperm.xlu0 %42, %v33
  %v44 = vpop.permute.xlu0 %43
  %47 = vset.pattern.permute.xlu0 0
  %48 = vperm.xlu0 %47, %v34
  %v49 = vpop.permute.xlu0 %48
  %52 = vset.pattern.permute.xlu0 0
  %53 = vperm.xlu0 %52, %v35
  %v54 = vpop.permute.xlu0 %53
  %57 = vset.pattern.permute.xlu0 0
  %58 = vperm.xlu0 %57, %v36
  %v59 = vpop.permute.xlu0 %58
  %62 = vset.pattern.permute.xlu0 0
  %63 = vperm.xlu0 %62, %v37
  %v64 = vpop.permute.xlu0 %63
  %67 = vset.pattern.permute.xlu0 0
  %68 = vperm.xlu0 %67, %v38
  %v69 = vpop.permute.xlu0 %68
  %72 = vset.pattern.permute.xlu0 0
  %73 = vperm.xlu0 %72, %v39
  %v74 = vpop.permute.xlu0 %73
  %77 = vset.pattern.permute.xlu0 0
  %78 = vperm.xlu0 %77, %v40
  %v79 = vpop.permute.xlu0 %78
  %v89 = vunpack.c.l.b16 %v25
  %v90 = vunpack.c.l.b16 %v26
  %v91 = vunpack.c.l.b16 %v27
  %v92 = vunpack.c.l.b16 %v28
  %v93 = vunpack.c.l.b16 %v29
  %v94 = vunpack.c.l.b16 %v30
  %v95 = vunpack.c.l.b16 %v31
  %v96 = vunpack.c.l.b16 %v32
  %v97 = vpack.c.b16 %v90, %v89
  %v98 = vpack.c.b16 %v92, %v91
  %v99 = vpack.c.b16 %v94, %v93
  %v100 = vpack.c.b16 %v96, %v95
  %vm101 = vcmask 64512
  %v103 = vsel %vm101, %v97, 0
  %v106 = vsel %vm101, %v98, 0
  %v109 = vsel %vm101, %v99, 0
  %v112 = vsel %vm101, %v100, 0
  %vm114 = vcmask 1043456
  %v116 = vsel %vm114, %v23, 0
  %v119 = vsel %vm114, %v24, 0
  %121 = vmatprep.subr.bf16.mxu0 %v119
  %122 = vmatpush1.bf16.msra.mxu0 %v116
  %123 = vmatprep.subr.bf16.mxu0 0
  %124 = vmatpush1.bf16.msra.mxu0 0
  %125 = vmatprep.subr.bf16.mxu0 0
  %126 = vmatpush1.bf16.msra.mxu0 0
  %127 = vmatprep.subr.bf16.mxu0 0
  %128 = vmatpush1.bf16.msra.mxu0 0
  %129 = vmatprep.subr.bf16.mxu0 0
  %130 = vmatpush1.bf16.msra.mxu0 0
  %131 = vmatprep.subr.bf16.mxu0 0
  %132 = vmatpush1.bf16.msra.mxu0 0
  %133 = vmatprep.subr.bf16.mxu0 0
  %134 = vmatpush1.bf16.msra.mxu0 0
  %135 = vmatprep.subr.bf16.mxu0 0
  %136 = vmatpush1.bf16.msra.mxu0 0
  %137 = vmatprep.subr.bf16.mxu0 0
  %138 = vmatpush1.bf16.msra.mxu0 0
  %139 = vmatprep.subr.bf16.mxu0 0
  %140 = vmatpush1.bf16.msra.mxu0 0
  %141 = vmatprep.subr.bf16.mxu0 0
  %142 = vmatpush1.bf16.msra.mxu0 0
  %143 = vmatprep.subr.bf16.mxu0 0
  %144 = vmatpush1.bf16.msra.mxu0 0
  %145 = vmatprep.subr.bf16.mxu0 0
  %146 = vmatpush1.bf16.msra.mxu0 0
  %147 = vmatprep.subr.bf16.mxu0 0
  %148 = vmatpush1.bf16.msra.mxu0 0
  %149 = vmatprep.subr.bf16.mxu0 0
  %150 = vmatpush1.bf16.msra.mxu0 0
  %151 = vmatprep.subr.bf16.mxu0 0
  %152 = vmatpush1.bf16.msra.mxu0 0
  %153 = vmatprep.mubr.bf16.mxu0 0
  %154 = vmatmul.mubr.bf16.gmra.mrb[0].mxu0 %v103
  %v155 = vpop.f32.mrb[0].mxu0
  %v156 = vadd.f32 %v44, %v155
  %v157 = vpop.f32.mrb[0].mxu0
  %v158 = vadd.f32 %v44, %v157
  %v159 = vpop.f32.mrb[0].mxu0
  %v160 = vadd.f32 %v49, %v159
  %v161 = vpop.f32.mrb[0].mxu0
  %v162 = vadd.f32 %v49, %v161
  %163 = vmatprep.mubr.bf16.mxu0 0
  %164 = vmatmul.mubr.bf16.gmra.mrb[0].mxu0 %v106
  %v165 = vpop.f32.mrb[0].mxu0
  %v166 = vadd.f32 %v54, %v165
  %v167 = vpop.f32.mrb[0].mxu0
  %v168 = vadd.f32 %v54, %v167
  %v169 = vpop.f32.mrb[0].mxu0
  %v170 = vadd.f32 %v59, %v169
  %v171 = vpop.f32.mrb[0].mxu0
  %v172 = vadd.f32 %v59, %v171
  %173 = vmatprep.mubr.bf16.mxu0 0
  %174 = vmatmul.mubr.bf16.gmra.mrb[0].mxu0 %v109
  %v175 = vpop.f32.mrb[0].mxu0
  %v176 = vadd.f32 %v64, %v175
  %v177 = vpop.f32.mrb[0].mxu0
  %v178 = vadd.f32 %v64, %v177
  %v179 = vpop.f32.mrb[0].mxu0
  %v180 = vadd.f32 %v69, %v179
  %v181 = vpop.f32.mrb[0].mxu0
  %v182 = vadd.f32 %v69, %v181
  %183 = vmatprep.mubr.bf16.mxu0 0
  %184 = vmatmul.mubr.bf16.gmra.mrb[0].mxu0 %v112
  %v185 = vpop.f32.mrb[0].mxu0
  %v186 = vadd.f32 %v74, %v185
  %v187 = vpop.f32.mrb[0].mxu0
  %v188 = vadd.f32 %v74, %v187
  %v189 = vpop.f32.mrb[0].mxu0
  %v190 = vadd.f32 %v79, %v189
  %v191 = vpop.f32.mrb[0].mxu0
  %v192 = vadd.f32 %v79, %v191
  %193 = vdwg.mxu0
  %v194 = vmax.f32 %v156, 0.0
  %v195 = vmax.f32 %v158, 0.0
  %v196 = vmax.f32 %v160, 0.0
  %v197 = vmax.f32 %v162, 0.0
  %v198 = vmax.f32 %v166, 0.0
  %v199 = vmax.f32 %v168, 0.0
  %v200 = vmax.f32 %v170, 0.0
  %v201 = vmax.f32 %v172, 0.0
  %v202 = vmax.f32 %v176, 0.0
  %v203 = vmax.f32 %v178, 0.0
  %v204 = vmax.f32 %v180, 0.0
  %v205 = vmax.f32 %v182, 0.0
  %v206 = vmax.f32 %v186, 0.0
  %v207 = vmax.f32 %v188, 0.0
  %v208 = vmax.f32 %v190, 0.0
  %v209 = vmax.f32 %v192, 0.0
  %v210 = vadd.f32 %v194, %v195
  %211 = vadd.xlane.f32.xlu0 %v210
  %v212 = vpop.xlane.xlu0 %211
  %v213 = vadd.f32 %v196, %v197
  %214 = vadd.xlane.f32.xlu0 %v213
  %v215 = vpop.xlane.xlu0 %214
  %v216 = vadd.f32 %v198, %v199
  %217 = vadd.xlane.f32.xlu0 %v216
  %v218 = vpop.xlane.xlu0 %217
  %v219 = vadd.f32 %v200, %v201
  %220 = vadd.xlane.f32.xlu0 %v219
  %v221 = vpop.xlane.xlu0 %220
  %v222 = vadd.f32 %v202, %v203
  %223 = vadd.xlane.f32.xlu0 %v222
  %v224 = vpop.xlane.xlu0 %223
  %v225 = vadd.f32 %v204, %v205
  %226 = vadd.xlane.f32.xlu0 %v225
  %v227 = vpop.xlane.xlu0 %226
  %v228 = vadd.f32 %v206, %v207
  %229 = vadd.xlane.f32.xlu0 %v228
  %v230 = vpop.xlane.xlu0 %229
  %v231 = vadd.f32 %v208, %v209
  %232 = vadd.xlane.f32.xlu0 %v231
  %v233 = vpop.xlane.xlu0 %232
  %v234 = vld [vmem:[%s3] sm:$0xf]
  %v235 = vld [vmem:[%s4] sm:$0xf]
  %vm236 = vcmask 523264
  %v238 = vsel %vm236, %v234, 0
  %240 = vmatprep.subr.mxu0 0.0
  %v241 = vand.u32 %v212, 4294901760
  %242 = vmatpush1.msra.mxu0 %v241
  %243 = vmatprep.subr.mxu0 0.0
  %v244 = vand.u32 %v215, 4294901760
  %245 = vmatpush1.msra.mxu0 %v244
  %246 = vmatprep.subr.mxu0 0.0
  %v247 = vand.u32 %v218, 4294901760
  %248 = vmatpush1.msra.mxu0 %v247
  %249 = vmatprep.subr.mxu0 0.0
  %v250 = vand.u32 %v221, 4294901760
  %251 = vmatpush1.msra.mxu0 %v250
  %252 = vmatprep.subr.mxu0 0.0
  %v253 = vand.u32 %v224, 4294901760
  %254 = vmatpush1.msra.mxu0 %v253
  %255 = vmatprep.subr.mxu0 0.0
  %v256 = vand.u32 %v227, 4294901760
  %257 = vmatpush1.msra.mxu0 %v256
  %258 = vmatprep.subr.mxu0 0.0
  %v259 = vand.u32 %v230, 4294901760
  %260 = vmatpush1.msra.mxu0 %v259
  %261 = vmatprep.subr.mxu0 0.0
  %v262 = vand.u32 %v233, 4294901760
  %263 = vmatpush1.msra.mxu0 %v262
  %264 = vmatprep.subr.mxu0 0.0
  %265 = vmatpush1.msra.mxu0 0.0
  %266 = vmatprep.subr.mxu0 0.0
  %267 = vmatpush1.msra.mxu0 0.0
  %268 = vmatprep.subr.mxu0 0.0
  %269 = vmatpush1.msra.mxu0 0.0
  %270 = vmatprep.subr.mxu0 0.0
  %271 = vmatpush1.msra.mxu0 0.0
  %272 = vmatprep.subr.mxu0 0.0
  %273 = vmatpush1.msra.mxu0 0.0
  %274 = vmatprep.subr.mxu0 0.0
  %275 = vmatpush1.msra.mxu0 0.0
  %276 = vmatprep.subr.mxu0 0.0
  %277 = vmatpush1.msra.mxu0 0.0
  %278 = vmatprep.subr.mxu0 0.0
  %279 = vmatpush1.msra.mxu0 0.0
  %280 = vmatprep.subr.mxu0 0.0
  %281 = vmatpush1.msra.mxu0 0.0
  %282 = vmatprep.subr.mxu0 0.0
  %283 = vmatpush1.msra.mxu0 0.0
  %284 = vmatprep.subr.mxu0 0.0
  %285 = vmatpush1.msra.mxu0 0.0
  %286 = vmatprep.subr.mxu0 0.0
  %287 = vmatpush1.msra.mxu0 0.0
  %288 = vmatprep.subr.mxu0 0.0
  %289 = vmatpush1.msra.mxu0 0.0
  %290 = vmatprep.subr.mxu0 0.0
  %291 = vmatpush1.msra.mxu0 0.0
  %292 = vmatprep.subr.mxu0 0.0
  %293 = vmatpush1.msra.mxu0 0.0
  %294 = vmatprep.subr.mxu0 0.0
  %295 = vmatpush1.msra.mxu0 0.0
  %296 = vmatprep.subr.mxu0 0.0
  %297 = vmatpush1.msra.mxu0 0.0
  %298 = vmatprep.subr.mxu0 0.0
  %299 = vmatpush1.msra.mxu0 0.0
  %300 = vmatprep.subr.mxu0 0.0
  %301 = vmatpush1.msra.mxu0 0.0
  %302 = vmatprep.subr.mxu0 0.0
  %303 = vmatpush1.msra.mxu0 0.0
  %304 = vmatprep.subr.mxu0 0.0
  %305 = vmatpush1.msra.mxu0 0.0
  %306 = vmatprep.subr.mxu0 0.0
  %307 = vmatpush1.msra.mxu0 0.0
  %308 = vmatprep.subr.mxu0 0.0
  %309 = vmatpush1.msra.mxu0 0.0
  %310 = vmatprep.subr.mxu0 0.0
  %311 = vmatpush1.msra.mxu0 0.0
  %312 = vmatprep.mubr.f32.mxu0 0.0
  %v313 = vand.u32 %v238, 4294901760
  %v314 = vsub.f32 %v238, %v313
  %v315 = vand.u32 %v314, 4294901760
  %v316 = vsub.f32 %v314, %v315
  %v317 = vand.u32 %v316, 4294901760
  %318 = vmatmul.mubr.f32.gmra.mrb[0].mxu0 %v317
  %v319 = vpop.f32.mrb[0].mxu0
  %v320 = vadd.f32 %v235, %v319
  %v321 = vpop.f32.mrb[0].mxu0
  %322 = vdwg.mxu0
  %323 = vmatprep.subr.mxu0 0.0
  %v324 = vand.u32 %v212, 4294901760
  %v325 = vsub.f32 %v212, %v324
  %v326 = vand.u32 %v325, 4294901760
  %v327 = vsub.f32 %v325, %v326
  %v328 = vand.u32 %v327, 4294901760
  %329 = vmatpush1.msra.mxu0 %v328
  %330 = vmatprep.subr.mxu0 0.0
  %v331 = vand.u32 %v215, 4294901760
  %v332 = vsub.f32 %v215, %v331
  %v333 = vand.u32 %v332, 4294901760
  %v334 = vsub.f32 %v332, %v333
  %v335 = vand.u32 %v334, 4294901760
  %336 = vmatpush1.msra.mxu0 %v335
  %337 = vmatprep.subr.mxu0 0.0
  %v338 = vand.u32 %v218, 4294901760
  %v339 = vsub.f32 %v218, %v338
  %v340 = vand.u32 %v339, 4294901760
  %v341 = vsub.f32 %v339, %v340
  %v342 = vand.u32 %v341, 4294901760
  %343 = vmatpush1.msra.mxu0 %v342
  %344 = vmatprep.subr.mxu0 0.0
  %v345 = vand.u32 %v221, 4294901760
  %v346 = vsub.f32 %v221, %v345
  %v347 = vand.u32 %v346, 4294901760
  %v348 = vsub.f32 %v346, %v347
  %v349 = vand.u32 %v348, 4294901760
  %350 = vmatpush1.msra.mxu0 %v349
  %351 = vmatprep.subr.mxu0 0.0
  %v352 = vand.u32 %v224, 4294901760
  %v353 = vsub.f32 %v224, %v352
  %v354 = vand.u32 %v353, 4294901760
  %v355 = vsub.f32 %v353, %v354
  %v356 = vand.u32 %v355, 4294901760
  %357 = vmatpush1.msra.mxu0 %v356
  %358 = vmatprep.subr.mxu0 0.0
  %v359 = vand.u32 %v227, 4294901760
  %v360 = vsub.f32 %v227, %v359
  %v361 = vand.u32 %v360, 4294901760
  %v362 = vsub.f32 %v360, %v361
  %v363 = vand.u32 %v362, 4294901760
  %364 = vmatpush1.msra.mxu0 %v363
  %365 = vmatprep.subr.mxu0 0.0
  %v366 = vand.u32 %v230, 4294901760
  %v367 = vsub.f32 %v230, %v366
  %v368 = vand.u32 %v367, 4294901760
  %v369 = vsub.f32 %v367, %v368
  %v370 = vand.u32 %v369, 4294901760
  %371 = vmatpush1.msra.mxu0 %v370
  %372 = vmatprep.subr.mxu0 0.0
  %v373 = vand.u32 %v233, 4294901760
  %v374 = vsub.f32 %v233, %v373
  %v375 = vand.u32 %v374, 4294901760
  %v376 = vsub.f32 %v374, %v375
  %v377 = vand.u32 %v376, 4294901760
  %378 = vmatpush1.msra.mxu0 %v377
  %379 = vmatprep.subr.mxu0 0.0
  %380 = vmatpush1.msra.mxu0 0.0
  %381 = vmatprep.subr.mxu0 0.0
  %382 = vmatpush1.msra.mxu0 0.0
  %383 = vmatprep.subr.mxu0 0.0
  %384 = vmatpush1.msra.mxu0 0.0
  %385 = vmatprep.subr.mxu0 0.0
  %386 = vmatpush1.msra.mxu0 0.0
  %387 = vmatprep.subr.mxu0 0.0
  %388 = vmatpush1.msra.mxu0 0.0
  %389 = vmatprep.subr.mxu0 0.0
  %390 = vmatpush1.msra.mxu0 0.0
  %391 = vmatprep.subr.mxu0 0.0
  %392 = vmatpush1.msra.mxu0 0.0
  %393 = vmatprep.subr.mxu0 0.0
  %394 = vmatpush1.msra.mxu0 0.0
  %395 = vmatprep.subr.mxu0 0.0
  %396 = vmatpush1.msra.mxu0 0.0
  %397 = vmatprep.subr.mxu0 0.0
  %398 = vmatpush1.msra.mxu0 0.0
  %399 = vmatprep.subr.mxu0 0.0
  %400 = vmatpush1.msra.mxu0 0.0
  %401 = vmatprep.subr.mxu0 0.0
  %402 = vmatpush1.msra.mxu0 0.0
  %403 = vmatprep.subr.mxu0 0.0
  %404 = vmatpush1.msra.mxu0 0.0
  %405 = vmatprep.subr.mxu0 0.0
  %406 = vmatpush1.msra.mxu0 0.0
  %407 = vmatprep.subr.mxu0 0.0
  %408 = vmatpush1.msra.mxu0 0.0
  %409 = vmatprep.subr.mxu0 0.0
  %410 = vmatpush1.msra.mxu0 0.0
  %411 = vmatprep.subr.mxu0 0.0
  %412 = vmatpush1.msra.mxu0 0.0
  %413 = vmatprep.subr.mxu0 0.0
  %414 = vmatpush1.msra.mxu0 0.0
  %415 = vmatprep.subr.mxu0 0.0
  %416 = vmatpush1.msra.mxu0 0.0
  %417 = vmatprep.subr.mxu0 0.0
  %418 = vmatpush1.msra.mxu0 0.0
  %419 = vmatprep.subr.mxu0 0.0
  %420 = vmatpush1.msra.mxu0 0.0
  %421 = vmatprep.subr.mxu0 0.0
  %422 = vmatpush1.msra.mxu0 0.0
  %423 = vmatprep.subr.mxu0 0.0
  %424 = vmatpush1.msra.mxu0 0.0
  %425 = vmatprep.subr.mxu0 0.0
  %426 = vmatpush1.msra.mxu0 0.0
  %427 = vmatprep.mubr.f32.mxu0 0.0
  %v428 = vand.u32 %v238, 4294901760
  %429 = vmatmul.mubr.f32.gmra.mrb[0].mxu0 %v428
  %v430 = vpop.f32.mrb[0].mxu0
  %v431 = vadd.f32 %v320, %v430
  %v432 = vpop.f32.mrb[0].mxu0
  %433 = vdwg.mxu0
  %434 = vmatprep.subr.mxu0 0.0
  %v435 = vand.u32 %v212, 4294901760
  %v436 = vsub.f32 %v212, %v435
  %437 = vmatpush1.msra.mxu0 %v436
  %438 = vmatprep.subr.mxu0 0.0
  %v439 = vand.u32 %v215, 4294901760
  %v440 = vsub.f32 %v215, %v439
  %441 = vmatpush1.msra.mxu0 %v440
  %442 = vmatprep.subr.mxu0 0.0
  %v443 = vand.u32 %v218, 4294901760
  %v444 = vsub.f32 %v218, %v443
  %445 = vmatpush1.msra.mxu0 %v444
  %446 = vmatprep.subr.mxu0 0.0
  %v447 = vand.u32 %v221, 4294901760
  %v448 = vsub.f32 %v221, %v447
  %449 = vmatpush1.msra.mxu0 %v448
  %450 = vmatprep.subr.mxu0 0.0
  %v451 = vand.u32 %v224, 4294901760
  %v452 = vsub.f32 %v224, %v451
  %453 = vmatpush1.msra.mxu0 %v452
  %454 = vmatprep.subr.mxu0 0.0
  %v455 = vand.u32 %v227, 4294901760
  %v456 = vsub.f32 %v227, %v455
  %457 = vmatpush1.msra.mxu0 %v456
  %458 = vmatprep.subr.mxu0 0.0
  %v459 = vand.u32 %v230, 4294901760
  %v460 = vsub.f32 %v230, %v459
  %461 = vmatpush1.msra.mxu0 %v460
  %462 = vmatprep.subr.mxu0 0.0
  %v463 = vand.u32 %v233, 4294901760
  %v464 = vsub.f32 %v233, %v463
  %465 = vmatpush1.msra.mxu0 %v464
  %466 = vmatprep.subr.mxu0 0.0
  %467 = vmatpush1.msra.mxu0 0.0
  %468 = vmatprep.subr.mxu0 0.0
  %469 = vmatpush1.msra.mxu0 0.0
  %470 = vmatprep.subr.mxu0 0.0
  %471 = vmatpush1.msra.mxu0 0.0
  %472 = vmatprep.subr.mxu0 0.0
  %473 = vmatpush1.msra.mxu0 0.0
  %474 = vmatprep.subr.mxu0 0.0
  %475 = vmatpush1.msra.mxu0 0.0
  %476 = vmatprep.subr.mxu0 0.0
  %477 = vmatpush1.msra.mxu0 0.0
  %478 = vmatprep.subr.mxu0 0.0
  %479 = vmatpush1.msra.mxu0 0.0
  %480 = vmatprep.subr.mxu0 0.0
  %481 = vmatpush1.msra.mxu0 0.0
  %482 = vmatprep.subr.mxu0 0.0
  %483 = vmatpush1.msra.mxu0 0.0
  %484 = vmatprep.subr.mxu0 0.0
  %485 = vmatpush1.msra.mxu0 0.0
  %486 = vmatprep.subr.mxu0 0.0
  %487 = vmatpush1.msra.mxu0 0.0
  %488 = vmatprep.subr.mxu0 0.0
  %489 = vmatpush1.msra.mxu0 0.0
  %490 = vmatprep.subr.mxu0 0.0
  %491 = vmatpush1.msra.mxu0 0.0
  %492 = vmatprep.subr.mxu0 0.0
  %493 = vmatpush1.msra.mxu0 0.0
  %494 = vmatprep.subr.mxu0 0.0
  %495 = vmatpush1.msra.mxu0 0.0
  %496 = vmatprep.subr.mxu0 0.0
  %497 = vmatpush1.msra.mxu0 0.0
  %498 = vmatprep.subr.mxu0 0.0
  %499 = vmatpush1.msra.mxu0 0.0
  %500 = vmatprep.subr.mxu0 0.0
  %501 = vmatpush1.msra.mxu0 0.0
  %502 = vmatprep.subr.mxu0 0.0
  %503 = vmatpush1.msra.mxu0 0.0
  %504 = vmatprep.subr.mxu0 0.0
  %505 = vmatpush1.msra.mxu0 0.0
  %506 = vmatprep.subr.mxu0 0.0
  %507 = vmatpush1.msra.mxu0 0.0
  %508 = vmatprep.subr.mxu0 0.0
  %509 = vmatpush1.msra.mxu0 0.0
  %510 = vmatprep.subr.mxu0 0.0
  %511 = vmatpush1.msra.mxu0 0.0
  %512 = vmatprep.subr.mxu0 0.0
  %513 = vmatpush1.msra.mxu0 0.0
  %514 = vmatprep.mubr.f32.mxu0 0.0
  %v515 = vand.u32 %v238, 4294901760
  %v516 = vsub.f32 %v238, %v515
  %517 = vmatmul.mubr.f32.gmra.mrb[0].mxu0 %v516
  %v518 = vpop.f32.mrb[0].mxu0
  %v519 = vadd.f32 %v431, %v518
  %v520 = vpop.f32.mrb[0].mxu0
  %521 = vdwg.mxu0
  %522 = vmatprep.subr.mxu0 0.0
  %v523 = vand.u32 %v212, 4294901760
  %524 = vmatpush1.msra.mxu0 %v523
  %525 = vmatprep.subr.mxu0 0.0
  %v526 = vand.u32 %v215, 4294901760
  %527 = vmatpush1.msra.mxu0 %v526
  %528 = vmatprep.subr.mxu0 0.0
  %v529 = vand.u32 %v218, 4294901760
  %530 = vmatpush1.msra.mxu0 %v529
  %531 = vmatprep.subr.mxu0 0.0
  %v532 = vand.u32 %v221, 4294901760
  %533 = vmatpush1.msra.mxu0 %v532
  %534 = vmatprep.subr.mxu0 0.0
  %v535 = vand.u32 %v224, 4294901760
  %536 = vmatpush1.msra.mxu0 %v535
  %537 = vmatprep.subr.mxu0 0.0
  %v538 = vand.u32 %v227, 4294901760
  %539 = vmatpush1.msra.mxu0 %v538
  %540 = vmatprep.subr.mxu0 0.0
  %v541 = vand.u32 %v230, 4294901760
  %542 = vmatpush1.msra.mxu0 %v541
  %543 = vmatprep.subr.mxu0 0.0
  %v544 = vand.u32 %v233, 4294901760
  %545 = vmatpush1.msra.mxu0 %v544
  %546 = vmatprep.subr.mxu0 0.0
  %547 = vmatpush1.msra.mxu0 0.0
  %548 = vmatprep.subr.mxu0 0.0
  %549 = vmatpush1.msra.mxu0 0.0
  %550 = vmatprep.subr.mxu0 0.0
  %551 = vmatpush1.msra.mxu0 0.0
  %552 = vmatprep.subr.mxu0 0.0
  %553 = vmatpush1.msra.mxu0 0.0
  %554 = vmatprep.subr.mxu0 0.0
  %555 = vmatpush1.msra.mxu0 0.0
  %556 = vmatprep.subr.mxu0 0.0
  %557 = vmatpush1.msra.mxu0 0.0
  %558 = vmatprep.subr.mxu0 0.0
  %559 = vmatpush1.msra.mxu0 0.0
  %560 = vmatprep.subr.mxu0 0.0
  %561 = vmatpush1.msra.mxu0 0.0
  %562 = vmatprep.subr.mxu0 0.0
  %563 = vmatpush1.msra.mxu0 0.0
  %564 = vmatprep.subr.mxu0 0.0
  %565 = vmatpush1.msra.mxu0 0.0
  %566 = vmatprep.subr.mxu0 0.0
  %567 = vmatpush1.msra.mxu0 0.0
  %568 = vmatprep.subr.mxu0 0.0
  %569 = vmatpush1.msra.mxu0 0.0
  %570 = vmatprep.subr.mxu0 0.0
  %571 = vmatpush1.msra.mxu0 0.0
  %572 = vmatprep.subr.mxu0 0.0
  %573 = vmatpush1.msra.mxu0 0.0
  %574 = vmatprep.subr.mxu0 0.0
  %575 = vmatpush1.msra.mxu0 0.0
  %576 = vmatprep.subr.mxu0 0.0
  %577 = vmatpush1.msra.mxu0 0.0
  %578 = vmatprep.subr.mxu0 0.0
  %579 = vmatpush1.msra.mxu0 0.0
  %580 = vmatprep.subr.mxu0 0.0
  %581 = vmatpush1.msra.mxu0 0.0
  %582 = vmatprep.subr.mxu0 0.0
  %583 = vmatpush1.msra.mxu0 0.0
  %584 = vmatprep.subr.mxu0 0.0
  %585 = vmatpush1.msra.mxu0 0.0
  %586 = vmatprep.subr.mxu0 0.0
  %587 = vmatpush1.msra.mxu0 0.0
  %588 = vmatprep.subr.mxu0 0.0
  %589 = vmatpush1.msra.mxu0 0.0
  %590 = vmatprep.subr.mxu0 0.0
  %591 = vmatpush1.msra.mxu0 0.0
  %592 = vmatprep.subr.mxu0 0.0
  %593 = vmatpush1.msra.mxu0 0.0
  %594 = vmatprep.mubr.f32.mxu0 0.0
  %v595 = vand.u32 %v238, 4294901760
  %v596 = vsub.f32 %v238, %v595
  %v597 = vand.u32 %v596, 4294901760
  %598 = vmatmul.mubr.f32.gmra.mrb[0].mxu0 %v597
  %v599 = vpop.f32.mrb[0].mxu0
  %v600 = vadd.f32 %v519, %v599
  %v601 = vpop.f32.mrb[0].mxu0
  %602 = vdwg.mxu0
  %603 = vmatprep.subr.mxu0 0.0
  %v604 = vand.u32 %v212, 4294901760
  %v605 = vsub.f32 %v212, %v604
  %v606 = vand.u32 %v605, 4294901760
  %607 = vmatpush1.msra.mxu0 %v606
  %608 = vmatprep.subr.mxu0 0.0
  %v609 = vand.u32 %v215, 4294901760
  %v610 = vsub.f32 %v215, %v609
  %v611 = vand.u32 %v610, 4294901760
  %612 = vmatpush1.msra.mxu0 %v611
  %613 = vmatprep.subr.mxu0 0.0
  %v614 = vand.u32 %v218, 4294901760
  %v615 = vsub.f32 %v218, %v614
  %v616 = vand.u32 %v615, 4294901760
  %617 = vmatpush1.msra.mxu0 %v616
  %618 = vmatprep.subr.mxu0 0.0
  %v619 = vand.u32 %v221, 4294901760
  %v620 = vsub.f32 %v221, %v619
  %v621 = vand.u32 %v620, 4294901760
  %622 = vmatpush1.msra.mxu0 %v621
  %623 = vmatprep.subr.mxu0 0.0
  %v624 = vand.u32 %v224, 4294901760
  %v625 = vsub.f32 %v224, %v624
  %v626 = vand.u32 %v625, 4294901760
  %627 = vmatpush1.msra.mxu0 %v626
  %628 = vmatprep.subr.mxu0 0.0
  %v629 = vand.u32 %v227, 4294901760
  %v630 = vsub.f32 %v227, %v629
  %v631 = vand.u32 %v630, 4294901760
  %632 = vmatpush1.msra.mxu0 %v631
  %633 = vmatprep.subr.mxu0 0.0
  %v634 = vand.u32 %v230, 4294901760
  %v635 = vsub.f32 %v230, %v634
  %v636 = vand.u32 %v635, 4294901760
  %637 = vmatpush1.msra.mxu0 %v636
  %638 = vmatprep.subr.mxu0 0.0
  %v639 = vand.u32 %v233, 4294901760
  %v640 = vsub.f32 %v233, %v639
  %v641 = vand.u32 %v640, 4294901760
  %642 = vmatpush1.msra.mxu0 %v641
  %643 = vmatprep.subr.mxu0 0.0
  %644 = vmatpush1.msra.mxu0 0.0
  %645 = vmatprep.subr.mxu0 0.0
  %646 = vmatpush1.msra.mxu0 0.0
  %647 = vmatprep.subr.mxu0 0.0
  %648 = vmatpush1.msra.mxu0 0.0
  %649 = vmatprep.subr.mxu0 0.0
  %650 = vmatpush1.msra.mxu0 0.0
  %651 = vmatprep.subr.mxu0 0.0
  %652 = vmatpush1.msra.mxu0 0.0
  %653 = vmatprep.subr.mxu0 0.0
  %654 = vmatpush1.msra.mxu0 0.0
  %655 = vmatprep.subr.mxu0 0.0
  %656 = vmatpush1.msra.mxu0 0.0
  %657 = vmatprep.subr.mxu0 0.0
  %658 = vmatpush1.msra.mxu0 0.0
  %659 = vmatprep.subr.mxu0 0.0
  %660 = vmatpush1.msra.mxu0 0.0
  %661 = vmatprep.subr.mxu0 0.0
  %662 = vmatpush1.msra.mxu0 0.0
  %663 = vmatprep.subr.mxu0 0.0
  %664 = vmatpush1.msra.mxu0 0.0
  %665 = vmatprep.subr.mxu0 0.0
  %666 = vmatpush1.msra.mxu0 0.0
  %667 = vmatprep.subr.mxu0 0.0
  %668 = vmatpush1.msra.mxu0 0.0
  %669 = vmatprep.subr.mxu0 0.0
  %670 = vmatpush1.msra.mxu0 0.0
  %671 = vmatprep.subr.mxu0 0.0
  %672 = vmatpush1.msra.mxu0 0.0
  %673 = vmatprep.subr.mxu0 0.0
  %674 = vmatpush1.msra.mxu0 0.0
  %675 = vmatprep.subr.mxu0 0.0
  %676 = vmatpush1.msra.mxu0 0.0
  %677 = vmatprep.subr.mxu0 0.0
  %678 = vmatpush1.msra.mxu0 0.0
  %679 = vmatprep.subr.mxu0 0.0
  %680 = vmatpush1.msra.mxu0 0.0
  %681 = vmatprep.subr.mxu0 0.0
  %682 = vmatpush1.msra.mxu0 0.0
  %683 = vmatprep.subr.mxu0 0.0
  %684 = vmatpush1.msra.mxu0 0.0
  %685 = vmatprep.subr.mxu0 0.0
  %686 = vmatpush1.msra.mxu0 0.0
  %687 = vmatprep.subr.mxu0 0.0
  %688 = vmatpush1.msra.mxu0 0.0
  %689 = vmatprep.subr.mxu0 0.0
  %690 = vmatpush1.msra.mxu0 0.0
  %691 = vmatprep.mubr.f32.mxu0 0.0
  %v692 = vand.u32 %v238, 4294901760
  %693 = vmatmul.mubr.f32.gmra.mrb[0].mxu0 %v692
  %v694 = vpop.f32.mrb[0].mxu0
  %v695 = vadd.f32 %v600, %v694
  %v696 = vpop.f32.mrb[0].mxu0
  %697 = vdwg.mxu0
  %698 = vmatprep.subr.mxu0 0.0
  %v699 = vand.u32 %v212, 4294901760
  %700 = vmatpush1.msra.mxu0 %v699
  %701 = vmatprep.subr.mxu0 0.0
  %v702 = vand.u32 %v215, 4294901760
  %703 = vmatpush1.msra.mxu0 %v702
  %704 = vmatprep.subr.mxu0 0.0
  %v705 = vand.u32 %v218, 4294901760
  %706 = vmatpush1.msra.mxu0 %v705
  %707 = vmatprep.subr.mxu0 0.0
  %v708 = vand.u32 %v221, 4294901760
  %709 = vmatpush1.msra.mxu0 %v708
  %710 = vmatprep.subr.mxu0 0.0
  %v711 = vand.u32 %v224, 4294901760
  %712 = vmatpush1.msra.mxu0 %v711
  %713 = vmatprep.subr.mxu0 0.0
  %v714 = vand.u32 %v227, 4294901760
  %715 = vmatpush1.msra.mxu0 %v714
  %716 = vmatprep.subr.mxu0 0.0
  %v717 = vand.u32 %v230, 4294901760
  %718 = vmatpush1.msra.mxu0 %v717
  %719 = vmatprep.subr.mxu0 0.0
  %v720 = vand.u32 %v233, 4294901760
  %721 = vmatpush1.msra.mxu0 %v720
  %722 = vmatprep.subr.mxu0 0.0
  %723 = vmatpush1.msra.mxu0 0.0
  %724 = vmatprep.subr.mxu0 0.0
  %725 = vmatpush1.msra.mxu0 0.0
  %726 = vmatprep.subr.mxu0 0.0
  %727 = vmatpush1.msra.mxu0 0.0
  %728 = vmatprep.subr.mxu0 0.0
  %729 = vmatpush1.msra.mxu0 0.0
  %730 = vmatprep.subr.mxu0 0.0
  %731 = vmatpush1.msra.mxu0 0.0
  %732 = vmatprep.subr.mxu0 0.0
  %733 = vmatpush1.msra.mxu0 0.0
  %734 = vmatprep.subr.mxu0 0.0
  %735 = vmatpush1.msra.mxu0 0.0
  %736 = vmatprep.subr.mxu0 0.0
  %737 = vmatpush1.msra.mxu0 0.0
  %738 = vmatprep.subr.mxu0 0.0
  %739 = vmatpush1.msra.mxu0 0.0
  %740 = vmatprep.subr.mxu0 0.0
  %741 = vmatpush1.msra.mxu0 0.0
  %742 = vmatprep.subr.mxu0 0.0
  %743 = vmatpush1.msra.mxu0 0.0
  %744 = vmatprep.subr.mxu0 0.0
  %745 = vmatpush1.msra.mxu0 0.0
  %746 = vmatprep.subr.mxu0 0.0
  %747 = vmatpush1.msra.mxu0 0.0
  %748 = vmatprep.subr.mxu0 0.0
  %749 = vmatpush1.msra.mxu0 0.0
  %750 = vmatprep.subr.mxu0 0.0
  %751 = vmatpush1.msra.mxu0 0.0
  %752 = vmatprep.subr.mxu0 0.0
  %753 = vmatpush1.msra.mxu0 0.0
  %754 = vmatprep.subr.mxu0 0.0
  %755 = vmatpush1.msra.mxu0 0.0
  %756 = vmatprep.subr.mxu0 0.0
  %757 = vmatpush1.msra.mxu0 0.0
  %758 = vmatprep.subr.mxu0 0.0
  %759 = vmatpush1.msra.mxu0 0.0
  %760 = vmatprep.subr.mxu0 0.0
  %761 = vmatpush1.msra.mxu0 0.0
  %762 = vmatprep.subr.mxu0 0.0
  %763 = vmatpush1.msra.mxu0 0.0
  %764 = vmatprep.subr.mxu0 0.0
  %765 = vmatpush1.msra.mxu0 0.0
  %766 = vmatprep.subr.mxu0 0.0
  %767 = vmatpush1.msra.mxu0 0.0
  %768 = vmatprep.subr.mxu0 0.0
  %769 = vmatpush1.msra.mxu0 0.0
  %770 = vmatprep.mubr.f32.mxu0 0.0
  %v771 = vand.u32 %v238, 4294901760
  %772 = vmatmul.mubr.f32.gmra.mrb[0].mxu0 %v771
  %v773 = vpop.f32.mrb[0].mxu0
  %v774 = vadd.f32 %v695, %v773
  %v775 = vpop.f32.mrb[0].mxu0
  %776 = vdwg.mxu0
  %vm777 = vcmask 3072
  %778 = vst.msk [vmem:[%s5] sm:$0xf] %vm777, %v774
  // Predicated region
  $region22: #{tpu_custom_call.1} parent=0 // pred_check
    _
  $region23: #{tpu_custom_call.1} parent=0 // pred_check_branch
    %780 = sbr.rel (0) target = $region25
  $region24: #{tpu_custom_call.1} parent=0 // pred_region
    _
  $region25: #{tpu_custom_call.1} parent=0 // pred_fallthru
    _
  // Predicated region
  $region26: #{tpu_custom_call.1} parent=0 // pred_check
    _
  $region27: #{tpu_custom_call.1} parent=0 // pred_check_branch
    %782 = sbr.rel (0) target = $region29
  $region28: #{tpu_custom_call.1} parent=0 // pred_region
    _
  $region29: #{tpu_custom_call.1} parent=0 // pred_fallthru
    _

</llo_original>
